<compile_context>
chip_gen: v5e
topology: v5e:2x2
jax: 0.10.0
libtpu: 0.0.40
codegen_flags: <defaults>
</compile_context>

<pallas_src>
import functools
import math

import jax
import jax.numpy as jnp
from jax.experimental import pallas as pl
from jax.experimental.pallas import tpu as pltpu


_LANE = 128          # TPU lane width: trailing feature dims padded to this
_TM = 256            # adjacency output-row tile (accumulator rows)
_TK = 512            # adjacency reduction tile (cols of A_hat / rows of support)
_LIN_TM = 256        # row tile for the dense in/out linear layers
_NODE_ALIGN = 512    # node-dim padding multiple: lcm(_TM, _TK, _LIN_TM)


def _round_up(x, m):
    return ((x + m - 1) // m) * m


def _pad2(a, rows, cols):
    return jnp.pad(a, ((0, rows - a.shape[0]), (0, cols - a.shape[1])))


def _vmem_limit(required_bytes):
    """Generation-aware VMEM budget: 2x computed residency, >= 32 MiB,
    capped at ~3/4 of physical VMEM (headroom for compiler-internal buffers).
    Allows > 64 MiB on 128-MiB parts (v5e/v6e); stays safe on v7x (64 MiB)."""
    try:
        cap = int(pltpu.get_tpu_info().vmem_capacity_bytes)
    except Exception:
        cap = 64 * 2**20
    return int(min(max(2 * required_bytes, 32 * 2**20), (cap * 3) // 4))


# ----------------------------------------------------------------------------
# Pallas kernels
# ----------------------------------------------------------------------------

def _linear_kernel(x_ref, w_ref, b_ref, o_ref, *, apply_relu):
    # bf16 x bf16 -> f32 MXU matmul (single pass), f32 bias add, optional ReLU.
    out = jnp.dot(x_ref[...].astype(jnp.bfloat16), w_ref[...],
                  preferred_element_type=jnp.float32)
    out = out + b_ref[...]
    if apply_relu:
        out = jnp.maximum(out, 0.0)
    o_ref[...] = out.astype(o_ref.dtype)


def pallas_linear(x, w_bf16, b, *, apply_relu, out_dtype=jnp.float32,
                  tm=_LIN_TM):
    n, fin = x.shape
    fout = w_bf16.shape[1]
    return pl.pallas_call(
        functools.partial(_linear_kernel, apply_relu=apply_relu),
        out_shape=jax.ShapeDtypeStruct((n, fout), out_dtype),
        grid_spec=pltpu.PrefetchScalarGridSpec(
            num_scalar_prefetch=0,
            grid=(n // tm,),
            in_specs=[
                pl.BlockSpec((tm, fin), lambda i: (i, 0)),
                pl.BlockSpec((fin, fout), lambda i: (0, 0)),
                pl.BlockSpec((1, fout), lambda i: (0, 0)),
            ],
            out_specs=pl.BlockSpec((tm, fout), lambda i: (i, 0)),
        ),
        compiler_params=pltpu.CompilerParams(
            dimension_semantics=("parallel",)),
    )(x, w_bf16, b)


def _gcnii_fused_kernel(x0_ref, adj_ref, w1_ref, w2_ref, h_ref,
                        sup_ref, acc_ref, *, tm, tk):
    """Grid: (layer l, output row-tile i, reduction tile k).

    h_ref is the VMEM-resident f32 output block (constant index_map); it is
    the layer-to-layer activation carry and is flushed to HBM exactly once.
    """
    l = pl.program_id(0)
    i = pl.program_id(1)
    k = pl.program_id(2)
    nk = pl.num_programs(2)

    # Chunked per-layer support: rows [k*tk, (k+1)*tk) of  support = h @ W1_eff
    # computed at (i==0, each k).  Legal: within layer l no h row-tile is
    # overwritten before step (l, 0, nk-1), and in that step this read
    # precedes the _finish write below.  Layer 0 reads x0 directly (no
    # bootstrap copy of x0 into h is needed).
    @pl.when(i == 0)
    def _mix():
        ks = pl.multiple_of(k * tk, tk)

        @pl.when(l == 0)
        def _():
            sup_ref[pl.ds(ks, tk), :] = jnp.dot(
                x0_ref[pl.ds(ks, tk), :], w1_ref[0],
                preferred_element_type=jnp.float32).astype(sup_ref.dtype)

        @pl.when(l > 0)
        def _():
            sup_ref[pl.ds(ks, tk), :] = jnp.dot(
                h_ref[pl.ds(ks, tk), :].astype(jnp.bfloat16), w1_ref[0],
                preferred_element_type=jnp.float32).astype(sup_ref.dtype)

    @pl.when(k == 0)
    def _zero_acc():
        acc_ref[...] = jnp.zeros_like(acc_ref)

    # acc += A_hat[i-tile, k-tile] @ support[k-chunk]   (bf16 x bf16 -> f32)
    ks = pl.multiple_of(k * tk, tk)
    acc_ref[...] += jnp.dot(adj_ref[...], sup_ref[pl.ds(ks, tk), :],
                            preferred_element_type=jnp.float32)

    # Finalize row tile i: add initial = x0 @ W2_eff, ReLU, write into the
    # resident activation buffer (input of next layer / final output).
    @pl.when(k == nk - 1)
    def _finish():
        rs = pl.multiple_of(i * tm, tm)
        initial = jnp.dot(x0_ref[pl.ds(rs, tm), :], w2_ref[0],
                          preferred_element_type=jnp.float32)
        h_ref[pl.ds(rs, tm), :] = jnp.maximum(acc_ref[...] + initial, 0.0)


def _adj_block_spec(tm, tk):
    index_map = lambda l, i, k: (i, k)
    try:
        # Triple-buffer the roofline-critical adjacency stream so the layer
        # boundary (weight DMA + first support chunk) does not expose a bubble.
        return pl.BlockSpec((tm, tk), index_map, pipeline_mode=pl.Buffered(3))
    except Exception:
        return pl.BlockSpec((tm, tk), index_map)


def pallas_gcnii_layers(x0_bf16, adj_bf16, w1_eff, w2_eff, *, tm=_TM, tk=_TK):
    n_pad, h_pad = x0_bf16.shape
    num_layers = w1_eff.shape[0]

    resident = (n_pad * h_pad * 2              # x0 (bf16, resident input)
                + n_pad * h_pad * 4            # h activations (f32 output)
                + n_pad * h_pad * 2            # support scratch (bf16)
                + tm * h_pad * 4               # accumulator
                + 3 * tm * tk * 2              # adj tiles (triple-buffered)
                + 2 * 2 * h_pad * h_pad * 2)   # W1/W2 (bf16, double-buffered)

    return pl.pallas_call(
        functools.partial(_gcnii_fused_kernel, tm=tm, tk=tk),
        out_shape=jax.ShapeDtypeStruct((n_pad, h_pad), jnp.float32),
        grid_spec=pltpu.PrefetchScalarGridSpec(
            num_scalar_prefetch=0,
            grid=(num_layers, n_pad // tm, n_pad // tk),
            in_specs=[
                # x0: fetched once (bf16), VMEM-resident for all layers.
                pl.BlockSpec((n_pad, h_pad), lambda l, i, k: (0, 0)),
                # A_hat tiles (bf16), streamed.
                _adj_block_spec(tm, tk),
                # Per-layer folded weights (bf16): re-DMA'd only when l changes.
                pl.BlockSpec((1, h_pad, h_pad), lambda l, i, k: (l, 0, 0)),
                pl.BlockSpec((1, h_pad, h_pad), lambda l, i, k: (l, 0, 0)),
            ],
            # Constant output index -> resident across the whole grid,
            # flushed to HBM exactly once at the end.
            out_specs=pl.BlockSpec((n_pad, h_pad), lambda l, i, k: (0, 0)),
            scratch_shapes=[
                pltpu.VMEM((n_pad, h_pad), jnp.bfloat16),  # per-layer support
                pltpu.VMEM((tm, h_pad), jnp.float32),      # adj-matmul acc
            ],
        ),
        compiler_params=pltpu.CompilerParams(
            # Sequential carry (h, support) across layers and row tiles =>
            # every axis must remain "arbitrary" (see v7x TODO at top).
            dimension_semantics=("arbitrary", "arbitrary", "arbitrary"),
            vmem_limit_bytes=_vmem_limit(resident)),
    )(x0_bf16, adj_bf16, w1_eff, w2_eff)


# ----------------------------------------------------------------------------
# Plain-JAX glue (preprocessing, not the hot path)
# ----------------------------------------------------------------------------

def gcn_norm_dense(edge_index, num_nodes):
    """Dense D^-1/2 (A + I) D^-1/2, matching PyG gcn_norm semantics:
    existing self-loops are dropped before adding exactly one per node."""
    src, dst = edge_index[0], edge_index[1]
    w = jnp.where(src == dst, 0.0, 1.0).astype(jnp.float32)
    a = jnp.zeros((num_nodes, num_nodes), jnp.float32).at[dst, src].add(w)
    a = a + jnp.eye(num_nodes, dtype=jnp.float32)
    deg = jnp.sum(a, axis=1)
    dinv = jax.lax.rsqrt(jnp.maximum(deg, 1e-12))
    return dinv[:, None] * a * dinv[None, :]


def fold_layer_weights(layers, alpha, lamda, h_pad):
    """Fold per-layer GCNII scalars into the weights (exact reparametrization):
         support = (1-b)(1-a) x  + b x@W1  == x  @ ((1-b)(1-a) I + b W1)
         initial = (1-b) a   x0 + b x0@W2  == x0 @ ((1-b) a   I + b W2)
    Stored bf16: MXU operands and per-layer DMA are both halved."""
    w1_eff, w2_eff = [], []
    for i, (w1, w2) in enumerate(layers):
        beta = math.log(lamda / (i + 1) + 1.0)
        h = w1.shape[0]
        eye = jnp.eye(h, dtype=jnp.float32)
        w1_eff.append(_pad2((1.0 - beta) * (1.0 - alpha) * eye + beta * w1,
                            h_pad, h_pad))
        w2_eff.append(_pad2((1.0 - beta) * alpha * eye + beta * w2,
                            h_pad, h_pad))
    return (jnp.stack(w1_eff).astype(jnp.bfloat16),
            jnp.stack(w2_eff).astype(jnp.bfloat16))


# ----------------------------------------------------------------------------
# Full GCNII forward
# ----------------------------------------------------------------------------

def gcnii_forward(params, x, edge_index, *, alpha, lamda):
    n, f = x.shape
    h = params["w_in"].shape[1]
    c = params["w_out"].shape[1]

    f_pad = _round_up(f, _LANE)
    h_pad = _round_up(h, _LANE)
    c_pad = _round_up(c, _LANE)
    # Node dim: multiple of every row/reduction tile; >= 2 reduction tiles so
    # the accumulator init/finalize path is exercised even at toy sizes.
    n_pad = max(_round_up(n, _NODE_ALIGN), 2 * _TK)

    # Preprocessing.
    adj = _pad2(gcn_norm_dense(edge_index, n), n_pad, n_pad).astype(jnp.bfloat16)
    x_p = _pad2(x.astype(jnp.float32), n_pad, f_pad)
    w_in = _pad2(params["w_in"], f_pad, h_pad).astype(jnp.bfloat16)
    b_in = _pad2(params["b_in"].reshape(1, -1), 1, h_pad)
    w_out = _pad2(params["w_out"], h_pad, c_pad).astype(jnp.bfloat16)
    b_out = _pad2(params["b_out"].reshape(1, -1), 1, c_pad)
    w1_eff, w2_eff = fold_layer_weights(params["layers"], alpha, lamda, h_pad)

    # Hot path (dropout is identity in eval mode).
    x_init = pallas_linear(x_p, w_in, b_in, apply_relu=True,
                           out_dtype=jnp.bfloat16)
    # Keep padded node rows exactly zero (insurance against non-zero bias).
    x_init = jnp.where((jnp.arange(n_pad) < n)[:, None], x_init,
                       jnp.zeros_like(x_init))

    h_last = pallas_gcnii_layers(x_init, adj, w1_eff, w2_eff)
    out = pallas_linear(h_last, w_out, b_out, apply_relu=False)
    return out[:n, :c]


# ----------------------------------------------------------------------------
# Deterministic parameter construction
# ----------------------------------------------------------------------------

def make_params(key, num_feats, dim_hidden, num_classes, num_layers):
    keys = jax.random.split(key, 2 + 2 * num_layers)

    def glorot(k, shape):
        lim = math.sqrt(6.0 / (shape[0] + shape[1]))
        return jax.random.uniform(k, shape, jnp.float32, -lim, lim)

    return {
        "w_in": glorot(keys[0], (num_feats, dim_hidden)),
        "b_in": jnp.zeros((dim_hidden,), jnp.float32),
        "w_out": glorot(keys[1], (dim_hidden, num_classes)),
        "b_out": jnp.zeros((num_classes,), jnp.float32),
        "layers": [(glorot(keys[2 + 2 * i], (dim_hidden, dim_hidden)),
                    glorot(keys[3 + 2 * i], (dim_hidden, dim_hidden)))
                   for i in range(num_layers)],
    }


if __name__ == "__main__":
    # Small config (dataset != 'ogbn-arxiv' branch -> GCNIIdenseConv path).
    NUM_NODES = 16
    NUM_FEATS = 8
    DIM_HIDDEN = 32
    NUM_CLASSES = 4
    NUM_LAYERS = 2
    ALPHA = 0.1
    LAMDA = 0.5

    key = jax.random.PRNGKey(0)
    k_x, k_e, k_p = jax.random.split(key, 3)

    x = jax.random.normal(k_x, (NUM_NODES, NUM_FEATS), jnp.float32)
    E = 40
    edge_index = jax.random.randint(k_e, (2, E), 0, NUM_NODES, jnp.int32)

    params = make_params(k_p, NUM_FEATS, DIM_HIDDEN, NUM_CLASSES, NUM_LAYERS)

    out = gcnii_forward(params, x, edge_index, alpha=ALPHA, lamda=LAMDA)
    out = jax.block_until_ready(out)
    assert out.shape == (NUM_NODES, NUM_CLASSES)
    assert bool(jnp.all(jnp.isfinite(out)))
    print("KERNEL_OK")
</pallas_src>

<mosaic_0001>
module attributes {stable_mosaic.version = 11 : i64} {
  func.func @_linear_kernel(%arg0: i32, %arg1: memref<256x128xf32, #tpu.memory_space<vmem>>, %arg2: memref<128x128xbf16, #tpu.memory_space<vmem>>, %arg3: memref<1x128xf32, #tpu.memory_space<vmem>>, %arg4: memref<256x128xbf16, #tpu.memory_space<vmem>>) attributes {dimension_semantics = [#tpu.dimension_semantics<parallel>], iteration_bounds = array<i64: 4>, scalar_prefetch = 0 : i64, scratch_operands = 0 : i64, tpu.core_type = #tpu.core_type<tc>, window_params = [{transform_indices = @transform_0, window_bounds = array<i64: 256, 128>}, {pipeline_mode = #tpu.pipeline_mode<synchronous>, transform_indices = @transform_1, window_bounds = array<i64: 128, 128>}, {pipeline_mode = #tpu.pipeline_mode<synchronous>, transform_indices = @transform_2, window_bounds = array<i64: 1, 128>}, {transform_indices = @transform_3, window_bounds = array<i64: 256, 128>}]} {
    %c0 = arith.constant 0 : index
    %c0_0 = arith.constant 0 : index
    %0 = vector.load %arg1[%c0, %c0_0] : memref<256x128xf32, #tpu.memory_space<vmem>>, vector<256x128xf32>
    %1 = arith.truncf %0 : vector<256x128xf32> to vector<256x128xbf16>
    %c0_1 = arith.constant 0 : index
    %c0_2 = arith.constant 0 : index
    %2 = vector.load %arg2[%c0_1, %c0_2] : memref<128x128xbf16, #tpu.memory_space<vmem>>, vector<128x128xbf16>
    %cst = arith.constant dense<0.000000e+00> : vector<256x128xf32>
    %3 = tpu.matmul %1, %2, %cst {dimension_numbers = #tpu.dot_dimension_numbers<[1], [0], [0], [1], [0, 0, 1, 1], [], []>} : vector<256x128xbf16>, vector<128x128xbf16>, vector<256x128xf32> -> vector<256x128xf32>
    %c0_3 = arith.constant 0 : index
    %c0_4 = arith.constant 0 : index
    %4 = vector.load %arg3[%c0_3, %c0_4] : memref<1x128xf32, #tpu.memory_space<vmem>>, vector<1x128xf32>
    %5 = vector.broadcast %4 : vector<1x128xf32> to vector<256x128xf32>
    %6 = arith.addf %3, %5 : vector<256x128xf32>
    %cst_5 = arith.constant 0.000000e+00 : f32
    %7 = vector.broadcast %cst_5 : f32 to vector<256x128xf32>
    %8 = arith.maximumf %6, %7 : vector<256x128xf32>
    %9 = arith.truncf %8 : vector<256x128xf32> to vector<256x128xbf16>
    %c0_6 = arith.constant 0 : index
    %c0_7 = arith.constant 0 : index
    %10 = vector.load %arg4[%c0_6, %c0_7] : memref<256x128xbf16, #tpu.memory_space<vmem>>, vector<256x128xbf16>
    tpu.vector_store %arg4[%c0_6, %c0_7], %9 {strides = array<i32>} : memref<256x128xbf16, #tpu.memory_space<vmem>>, vector<256x128xbf16>,
    return
  }
  func.func @transform_0(%arg0: i32) -> (i32, i32) {
    %c0_i32 = arith.constant 0 : i32
    %c0_i32_0 = arith.constant 0 : i32
    return %arg0, %c0_i32 : i32, i32
  }
  func.func @transform_1(%arg0: i32) -> (i32, i32) {
    %c0_i32 = arith.constant 0 : i32
    %c0_i32_0 = arith.constant 0 : i32
    %c0_i32_1 = arith.constant 0 : i32
    return %c0_i32, %c0_i32_0 : i32, i32
  }
  func.func @transform_2(%arg0: i32) -> (i32, i32) {
    %c0_i32 = arith.constant 0 : i32
    %c0_i32_0 = arith.constant 0 : i32
    %c0_i32_1 = arith.constant 0 : i32
    return %c0_i32, %c0_i32_0 : i32, i32
  }
  func.func @transform_3(%arg0: i32) -> (i32, i32) {
    %c0_i32 = arith.constant 0 : i32
    %c0_i32_0 = arith.constant 0 : i32
    return %arg0, %c0_i32 : i32, i32
  }
}

</mosaic_0001>

<llo_original>
// kernel: tpu_custom_call.1
$region0: #{tpu_custom_call.1}
  #allocation0 [shape = 'u32[]', space=smem, size = 0x4, offset = 0x4, fixed_abs, tag = 'smem constant byte address 0x4 - core index']
  #allocation1 [shape = 'u32[72,128]{1,0:T(1,128)}', space=vmem, size = 0x9000, scoped, tag = 'internal scratch']
  %s0 = inlined_call_operand.hbm [shape: f32[1024,128], index: 0, kind: input, shape index: {}]
  %s1 = inlined_call_operand.hbm [shape: bf16[128,128], index: 1, kind: input, shape index: {}]
  %s2 = inlined_call_operand.vmem [shape: f32[1,128], index: 2, kind: input, shape index: {}]
  %s3 = inlined_call_operand.hbm [shape: bf16[1024,128], index: 3, kind: output, shape index: {}]
  %s4 = sld [smem:[#allocation0]]
  $region53: #{tpu_custom_call.1} parent=0
    _
  %s6 = ssub.s32 1, %s4
  %s7 = scalar_select 0, %s6, %s4
  $region1: #{tpu_custom_call.1} parent=0
    #allocation2 [shape = 'u8[262144]{0}', space=vmem, size = 0x40000, scoped, tag = 'input window, operand 0']
    #allocation3 [shape = 's32[2]{0}', space=sflag, size = 0x8, scoped, tag = 'scoped memory for tpu_custom_call.1']
    #allocation4 [shape = 's32[2]{0}', space=sflag, size = 0x8, scoped, tag = 'scoped memory for tpu_custom_call.1']
    #allocation5 [shape = 'u8[32768]{0}', space=vmem, size = 0x8000, scoped, tag = 'input window, operand 1, single buffered']
    #allocation6 [shape = 's32[1]{0}', space=sflag, size = 0x4, scoped, tag = 'scoped memory for tpu_custom_call.1']
    #allocation7 [shape = 'u8[131072]{0}', space=vmem, size = 0x20000, scoped, tag = 'output window, operand 0']
    %8 = vsyncpa [#allocation3], 0
    %s9 = scalar_lea.sflag [#allocation3], 1
    %10 = vsyncpa %s9, 0
    %11 = vsyncpa [#allocation6], 0
    %12 = vsyncpa [#allocation4], 0
    %s13 = scalar_lea.sflag [#allocation4], 1
    %14 = vsyncpa %s13, 0
    loop: start=0, step=1, limit=6
    $region2: #{tpu_custom_call.1} parent=1 // loop_pre_header
      _
    $region3: #{tpu_custom_call.1} parent=1 // loop_header
      %s16 = sphi 0, %s20
      %p17 = scmp.ge.s32.totalorder %s16, 6
      %s26 = sphi 0, %s28
      %s29 = sphi 0, %s26
      %s30 = sphi 0, %s29
      %s46 = sphi 0, %s30
      %s50 = sphi 0, %s50
      %s52 = sphi 0, %s50
      %s53 = sphi 0, %s52
      %s67 = sphi 0, %s53
      %s71 = sphi 0, %s71
      %s73 = sphi 0, %s71
      %s74 = sphi 0, %s73
      %s88 = sphi 0, %s74
      %s94 = sphi 0, %s96
      %s97 = sphi 0, %s94
      %s98 = sphi 0, %s97
      %s114 = sphi 0, %s98
    $region4: #{tpu_custom_call.1} parent=1 // loop_header_branch
      %19 = sbr.rel (%p17) target = $region8
    $region5: #{tpu_custom_call.1} parent=1 // loop_body
      %s21 = ssub.s32 %s16, 1
      %s22 = ssub.s32 %s16, 2
      %s23 = sadd.s32 %s16, 1
      %s24 = ssub.s32 %s16, %s23
      %p25 = scmp.eq.s32.totalorder %s24, 0
      %s27 = sadd.s32 %s26, 1
      %s28 = scalar_select %p25, %s26, %s27
      %p31 = pneg %p25
      %p32 = scmp.eq.s32.totalorder %s16, 3
      %p33 = por %p31, %p32
      %p34 = scmp.ne.s32.totalorder %s26, %s29
      %p35 = scmp.eq.s32.totalorder %s16, 0
      %p36 = por %p34, %p35
      %p37 = scmp.ne.s32.totalorder %s26, %s29
      %p38 = scmp.eq.s32.totalorder %s21, 3
      %p39 = por %p37, %p38
      %p40 = scmp.ne.s32.totalorder %s29, %s30
      %p41 = scmp.eq.s32.totalorder %s21, 0
      %p42 = por %p40, %p41
      %p43 = scmp.ne.s32.totalorder %s29, %s30
      %p44 = scmp.eq.s32.totalorder %s22, 3
      %p45 = por %p43, %p44
      %p47 = scmp.ne.s32.totalorder %s30, %s46
      %p48 = scmp.eq.s32.totalorder %s22, 0
      %p49 = por %p47, %p48
      %s51 = sadd.s32 %s50, 1
      %p54 = scmp.eq.s32.totalorder %s16, 3
      %p55 = scmp.ne.s32.totalorder %s50, %s52
      %p56 = scmp.eq.s32.totalorder %s16, 0
      %p57 = por %p55, %p56
      %p58 = scmp.ne.s32.totalorder %s50, %s52
      %p59 = scmp.eq.s32.totalorder %s21, 3
      %p60 = por %p58, %p59
      %p61 = scmp.ne.s32.totalorder %s52, %s53
      %p62 = scmp.eq.s32.totalorder %s21, 0
      %p63 = por %p61, %p62
      %p64 = scmp.ne.s32.totalorder %s52, %s53
      %p65 = scmp.eq.s32.totalorder %s22, 3
      %p66 = por %p64, %p65
      %p68 = scmp.ne.s32.totalorder %s53, %s67
      %p69 = scmp.eq.s32.totalorder %s22, 0
      %p70 = por %p68, %p69
      %s72 = sadd.s32 %s71, 1
      %p75 = scmp.eq.s32.totalorder %s16, 3
      %p76 = scmp.ne.s32.totalorder %s71, %s73
      %p77 = scmp.eq.s32.totalorder %s16, 0
      %p78 = por %p76, %p77
      %p79 = scmp.ne.s32.totalorder %s71, %s73
      %p80 = scmp.eq.s32.totalorder %s21, 3
      %p81 = por %p79, %p80
      %p82 = scmp.ne.s32.totalorder %s73, %s74
      %p83 = scmp.eq.s32.totalorder %s21, 0
      %p84 = por %p82, %p83
      %p85 = scmp.ne.s32.totalorder %s73, %s74
      %p86 = scmp.eq.s32.totalorder %s22, 3
      %p87 = por %p85, %p86
      %p89 = scmp.ne.s32.totalorder %s74, %s88
      %p90 = scmp.eq.s32.totalorder %s22, 0
      %p91 = por %p89, %p90
      %s92 = ssub.s32 %s16, %s23
      %p93 = scmp.eq.s32.totalorder %s92, 0
      %s95 = sadd.s32 %s94, 1
      %s96 = scalar_select %p93, %s94, %s95
      %p99 = pneg %p93
      %p100 = scmp.eq.s32.totalorder %s16, 3
      %p101 = por %p99, %p100
      %p102 = scmp.ne.s32.totalorder %s94, %s97
      %p103 = scmp.eq.s32.totalorder %s16, 0
      %p104 = por %p102, %p103
      %p105 = scmp.ne.s32.totalorder %s94, %s97
      %p106 = scmp.eq.s32.totalorder %s21, 3
      %p107 = por %p105, %p106
      %p108 = scmp.ne.s32.totalorder %s97, %s98
      %p109 = scmp.eq.s32.totalorder %s21, 0
      %p110 = por %p108, %p109
      %p111 = scmp.ne.s32.totalorder %s97, %s98
      %p112 = scmp.eq.s32.totalorder %s22, 3
      %p113 = por %p111, %p112
      %p115 = scmp.ne.s32.totalorder %s98, %s114
      %p116 = scmp.eq.s32.totalorder %s22, 0
      %p117 = por %p115, %p116
      %p118 = scmp.le.s32.totalorder 1, %s16
      %p119 = scmp.lt.s32.totalorder %s16, 5
      %p120 = pnand %p118, %p119
      %p121 = pneg %p120
      // Predicated region
      $region9: #{tpu_custom_call.1} parent=5 // pred_check
        _
      $region10: #{tpu_custom_call.1} parent=5 // pred_check_branch
        %123 = sbr.rel (%p120) target = $region12
      $region11: #{tpu_custom_call.1} parent=5 // pred_region
        %s124 = ssub.s32 %s16, 1
        // Predicated region
        $region13: #{tpu_custom_call.1} parent=11 // pred_check
          %p125 = pneg %p63
        $region14: #{tpu_custom_call.1} parent=11 // pred_check_branch
          %127 = sbr.rel (%p125) target = $region16
        $region15: #{tpu_custom_call.1} parent=11 // pred_region
          %129 = vsyncadd [#allocation6], 0
          %s130 = sshll.u32 %s1, 4
          %s131 = int_to_ptr.hbm [resolvable:$true] %s130
          %s132 = sshll.u32 [#allocation5], 4
          %s133 = int_to_ptr.vmem [resolvable:$true] %s132
          %138 = dma.hbm_to_vmem [thread:$0]  %s131, 1024, %s133, [#allocation6], 64, 64, 4
        $region16: #{tpu_custom_call.1} parent=11 // pred_fallthru
          _
        // Predicated region
        $region17: #{tpu_custom_call.1} parent=11 // pred_check
          %p139 = pneg %p84
        $region18: #{tpu_custom_call.1} parent=11 // pred_check_branch
          %141 = sbr.rel (%p139) target = $region20
        $region19: #{tpu_custom_call.1} parent=11 // pred_region
          _
        $region20: #{tpu_custom_call.1} parent=11 // pred_fallthru
          _
      $region12: #{tpu_custom_call.1} parent=5 // pred_fallthru
        _
      %p142 = scmp.lt.s32.totalorder %s16, 4
      // Predicated region
      $region21: #{tpu_custom_call.1} parent=5 // pred_check
        %p143 = pneg %p142
      $region22: #{tpu_custom_call.1} parent=5 // pred_check_branch
        %145 = sbr.rel (%p143) target = $region24
      $region23: #{tpu_custom_call.1} parent=5 // pred_region
        // Predicated region
        $region25: #{tpu_custom_call.1} parent=23 // pred_check
          %p146 = pneg %p36
        $region26: #{tpu_custom_call.1} parent=23 // pred_check_branch
          %148 = sbr.rel (%p146) target = $region28
        $region27: #{tpu_custom_call.1} parent=23 // pred_region
          %s149 = sand.u32 %s26, 1
          %s150 = scalar_lea.sflag [#allocation3], %s149
          %s151 = sand.u32 %s26, 1
          %s152 = smul.addr %s151, 256
          %s153 = scalar_lea.vmem [#allocation2], %s152
          %s154 = smul.u32 32, %s16
          %156 = vsyncadd %s150, 0
          %s157 = smul.addr %s154, 8
          %s158 = scalar_lea.hbm %s0, %s157
          %s159 = sshll.u32 %s158, 4
          %s160 = int_to_ptr.hbm [resolvable:$true] %s159
          %s161 = sshll.u32 %s153, 4
          %s162 = int_to_ptr.vmem [resolvable:$true] %s161
          %167 = dma.hbm_to_vmem [thread:$0]  %s160, 4096, %s162, %s150, 128, 128, 8
        $region28: #{tpu_custom_call.1} parent=23 // pred_fallthru
          _
      $region24: #{tpu_custom_call.1} parent=5 // pred_fallthru
        _
      %p168 = scmp.le.s32.totalorder 1, %s16
      %p169 = scmp.lt.s32.totalorder %s16, 5
      %p170 = pnand %p168, %p169
      %p171 = pneg %p170
      // Predicated region
      $region29: #{tpu_custom_call.1} parent=5 // pred_check
        _
      $region30: #{tpu_custom_call.1} parent=5 // pred_check_branch
        %173 = sbr.rel (%p170) target = $region32
      $region31: #{tpu_custom_call.1} parent=5 // pred_region
        %s174 = ssub.s32 %s16, 1
        %s175 = sand.u32 %s29, 1
        %s176 = scalar_lea.sflag [#allocation3], %s175
        %s177 = sand.u32 %s29, 1
        %s178 = smul.addr %s177, 256
        %s179 = scalar_lea.vmem [#allocation2], %s178
        // Predicated region
        $region33: #{tpu_custom_call.1} parent=31 // pred_check
          %p180 = pneg %p42
        $region34: #{tpu_custom_call.1} parent=31 // pred_check_branch
          %182 = sbr.rel (%p180) target = $region36
        $region35: #{tpu_custom_call.1} parent=31 // pred_region
          %184 = dma.done %s176, 4096
        $region36: #{tpu_custom_call.1} parent=31 // pred_fallthru
          _
        // Predicated region
        $region37: #{tpu_custom_call.1} parent=31 // pred_check
          %p185 = pneg %p63
        $region38: #{tpu_custom_call.1} parent=31 // pred_check_branch
          %187 = sbr.rel (%p185) target = $region40
        $region39: #{tpu_custom_call.1} parent=31 // pred_region
          %189 = dma.done [#allocation6], 1024
        $region40: #{tpu_custom_call.1} parent=31 // pred_fallthru
          _
        %s190 = sand.u32 %s29, 1
        %s191 = scalar_lea.sflag [#allocation3], %s190
        %s192 = sand.u32 %s29, 1
        %s193 = smul.addr %s192, 256
        %s194 = scalar_lea.vmem [#allocation2], %s193
        %p195 = pneg %p42
        %p196 = pneg %p39
        %p197 = pneg %p63
        %p198 = pneg %p60
        %p199 = pneg %p84
        %p200 = pneg %p81
        %p201 = pneg %p110
        %p202 = pneg %p107
        %s203 = sand.u32 %s97, 1
        %s204 = scalar_lea.sflag [#allocation4], %s203
        %s205 = sand.u32 %s97, 1
        %s206 = smul.addr %s205, 128
        %s207 = scalar_lea.vmem [#allocation7], %s206
        %s208 = smul.u32 32, %s21
        %s209 = smul.u32 32, %s21
        %v210 = vld [vmem:[%s179] sm:$0xff]
        %v211 = vld [vmem:[%s179 + $0x8] sm:$0xff]
        %v212 = vld [vmem:[%s179 + $0x10] sm:$0xff]
        %v213 = vld [vmem:[%s179 + $0x18] sm:$0xff]
        %v214 = vld [vmem:[%s179 + $0x20] sm:$0xff]
        %v215 = vld [vmem:[%s179 + $0x28] sm:$0xff]
        %v216 = vld [vmem:[%s179 + $0x30] sm:$0xff]
        %v217 = vld [vmem:[%s179 + $0x38] sm:$0xff]
        %v218 = vld [vmem:[%s179 + $0x40] sm:$0xff]
        %v219 = vld [vmem:[%s179 + $0x48] sm:$0xff]
        %v220 = vld [vmem:[%s179 + $0x50] sm:$0xff]
        %v221 = vld [vmem:[%s179 + $0x58] sm:$0xff]
        %v222 = vld [vmem:[%s179 + $0x60] sm:$0xff]
        %v223 = vld [vmem:[%s179 + $0x68] sm:$0xff]
        %v224 = vld [vmem:[%s179 + $0x70] sm:$0xff]
        %v225 = vld [vmem:[%s179 + $0x78] sm:$0xff]
        %v226 = vld [vmem:[%s179 + $0x80] sm:$0xff]
        %v227 = vld [vmem:[%s179 + $0x88] sm:$0xff]
        %v228 = vld [vmem:[%s179 + $0x90] sm:$0xff]
        %v229 = vld [vmem:[%s179 + $0x98] sm:$0xff]
        %v230 = vld [vmem:[%s179 + $0xa0] sm:$0xff]
        %v231 = vld [vmem:[%s179 + $0xa8] sm:$0xff]
        %v232 = vld [vmem:[%s179 + $0xb0] sm:$0xff]
        %v233 = vld [vmem:[%s179 + $0xb8] sm:$0xff]
        %v234 = vld [vmem:[%s179 + $0xc0] sm:$0xff]
        %v235 = vld [vmem:[%s179 + $0xc8] sm:$0xff]
        %v236 = vld [vmem:[%s179 + $0xd0] sm:$0xff]
        %v237 = vld [vmem:[%s179 + $0xd8] sm:$0xff]
        %v238 = vld [vmem:[%s179 + $0xe0] sm:$0xff]
        %v239 = vld [vmem:[%s179 + $0xe8] sm:$0xff]
        %v240 = vld [vmem:[%s179 + $0xf0] sm:$0xff]
        %v241 = vld [vmem:[%s179 + $0xf8] sm:$0xff]
        %v242 = vpack.c.bf16 %v211, %v210
        %v243 = vpack.c.bf16 %v213, %v212
        %v244 = vpack.c.bf16 %v215, %v214
        %v245 = vpack.c.bf16 %v217, %v216
        %v246 = vpack.c.bf16 %v219, %v218
        %v247 = vpack.c.bf16 %v221, %v220
        %v248 = vpack.c.bf16 %v223, %v222
        %v249 = vpack.c.bf16 %v225, %v224
        %v250 = vpack.c.bf16 %v227, %v226
        %v251 = vpack.c.bf16 %v229, %v228
        %v252 = vpack.c.bf16 %v231, %v230
        %v253 = vpack.c.bf16 %v233, %v232
        %v254 = vpack.c.bf16 %v235, %v234
        %v255 = vpack.c.bf16 %v237, %v236
        %v256 = vpack.c.bf16 %v239, %v238
        %v257 = vpack.c.bf16 %v241, %v240
        %v258 = vld [vmem:[#allocation5] sm:$0xf]
        %v259 = vld [vmem:[#allocation5 + $0x4] sm:$0xf]
        %v260 = vld [vmem:[#allocation5 + $0x8] sm:$0xf]
        %v261 = vld [vmem:[#allocation5 + $0xc] sm:$0xf]
        %v262 = vld [vmem:[#allocation5 + $0x10] sm:$0xf]
        %v263 = vld [vmem:[#allocation5 + $0x14] sm:$0xf]
        %v264 = vld [vmem:[#allocation5 + $0x18] sm:$0xf]
        %v265 = vld [vmem:[#allocation5 + $0x1c] sm:$0xf]
        %v266 = vld [vmem:[#allocation5 + $0x20] sm:$0xf]
        %v267 = vld [vmem:[#allocation5 + $0x24] sm:$0xf]
        %v268 = vld [vmem:[#allocation5 + $0x28] sm:$0xf]
        %v269 = vld [vmem:[#allocation5 + $0x2c] sm:$0xf]
        %v270 = vld [vmem:[#allocation5 + $0x30] sm:$0xf]
        %v271 = vld [vmem:[#allocation5 + $0x34] sm:$0xf]
        %v272 = vld [vmem:[#allocation5 + $0x38] sm:$0xf]
        %v273 = vld [vmem:[#allocation5 + $0x3c] sm:$0xf]
        %v274 = vld [vmem:[%s2] sm:$0x1]
        %v276 = vperm.slane %v274, 0
        %v294 = vunpack.c.l.b16 %v258
        %v295 = vunpack.c.l.b16 %v259
        %v296 = vunpack.c.l.b16 %v260
        %v297 = vunpack.c.l.b16 %v261
        %v298 = vunpack.c.l.b16 %v262
        %v299 = vunpack.c.l.b16 %v263
        %v300 = vunpack.c.l.b16 %v264
        %v301 = vunpack.c.l.b16 %v265
        %v302 = vunpack.c.l.b16 %v266
        %v303 = vunpack.c.l.b16 %v267
        %v304 = vunpack.c.l.b16 %v268
        %v305 = vunpack.c.l.b16 %v269
        %v306 = vunpack.c.l.b16 %v270
        %v307 = vunpack.c.l.b16 %v271
        %v308 = vunpack.c.l.b16 %v272
        %v309 = vunpack.c.l.b16 %v273
        %v310 = vpack.c.b16 %v295, %v294
        %v311 = vpack.c.b16 %v297, %v296
        %v312 = vpack.c.b16 %v299, %v298
        %v313 = vpack.c.b16 %v301, %v300
        %v314 = vpack.c.b16 %v303, %v302
        %v315 = vpack.c.b16 %v305, %v304
        %v316 = vpack.c.b16 %v307, %v306
        %v317 = vpack.c.b16 %v309, %v308
        %326 = vmatpush.bf16.msra.mxu0 %v317
        %327 = vmatpush.bf16.msra.mxu0 %v316
        %328 = vmatpush.bf16.msra.mxu0 %v315
        %329 = vmatpush.bf16.msra.mxu0 %v314
        %330 = vmatpush.bf16.msra.mxu0 %v313
        %331 = vmatpush.bf16.msra.mxu0 %v312
        %332 = vmatpush.bf16.msra.mxu0 %v311
        %333 = vmatpush.bf16.msra.mxu0 %v310
        %334 = vmatmul.bf16.gmra.mxu0 %v242
        %v335 = vpop.f32.mrf.mxu0
        %v336 = vadd.f32 %v276, %v335
        %v337 = vpop.f32.mrf.mxu0
        %v338 = vadd.f32 %v276, %v337
        %339 = vmatmul.bf16.gmra.mxu0 %v243
        %v340 = vpop.f32.mrf.mxu0
        %v341 = vadd.f32 %v276, %v340
        %v342 = vpop.f32.mrf.mxu0
        %v343 = vadd.f32 %v276, %v342
        %344 = vmatmul.bf16.gmra.mxu0 %v244
        %v345 = vpop.f32.mrf.mxu0
        %v346 = vadd.f32 %v276, %v345
        %v347 = vpop.f32.mrf.mxu0
        %v348 = vadd.f32 %v276, %v347
        %349 = vmatmul.bf16.gmra.mxu0 %v245
        %v350 = vpop.f32.mrf.mxu0
        %v351 = vadd.f32 %v276, %v350
        %v352 = vpop.f32.mrf.mxu0
        %v353 = vadd.f32 %v276, %v352
        %354 = vmatmul.bf16.gmra.mxu0 %v246
        %v355 = vpop.f32.mrf.mxu0
        %v356 = vadd.f32 %v276, %v355
        %v357 = vpop.f32.mrf.mxu0
        %v358 = vadd.f32 %v276, %v357
        %359 = vmatmul.bf16.gmra.mxu0 %v247
        %v360 = vpop.f32.mrf.mxu0
        %v361 = vadd.f32 %v276, %v360
        %v362 = vpop.f32.mrf.mxu0
        %v363 = vadd.f32 %v276, %v362
        %364 = vmatmul.bf16.gmra.mxu0 %v248
        %v365 = vpop.f32.mrf.mxu0
        %v366 = vadd.f32 %v276, %v365
        %v367 = vpop.f32.mrf.mxu0
        %v368 = vadd.f32 %v276, %v367
        %369 = vmatmul.bf16.gmra.mxu0 %v249
        %v370 = vpop.f32.mrf.mxu0
        %v371 = vadd.f32 %v276, %v370
        %v372 = vpop.f32.mrf.mxu0
        %v373 = vadd.f32 %v276, %v372
        %374 = vmatmul.bf16.gmra.mxu0 %v250
        %v375 = vpop.f32.mrf.mxu0
        %v376 = vadd.f32 %v276, %v375
        %v377 = vpop.f32.mrf.mxu0
        %v378 = vadd.f32 %v276, %v377
        %379 = vmatmul.bf16.gmra.mxu0 %v251
        %v380 = vpop.f32.mrf.mxu0
        %v381 = vadd.f32 %v276, %v380
        %v382 = vpop.f32.mrf.mxu0
        %v383 = vadd.f32 %v276, %v382
        %384 = vmatmul.bf16.gmra.mxu0 %v252
        %v385 = vpop.f32.mrf.mxu0
        %v386 = vadd.f32 %v276, %v385
        %v387 = vpop.f32.mrf.mxu0
        %v388 = vadd.f32 %v276, %v387
        %389 = vmatmul.bf16.gmra.mxu0 %v253
        %v390 = vpop.f32.mrf.mxu0
        %v391 = vadd.f32 %v276, %v390
        %v392 = vpop.f32.mrf.mxu0
        %v393 = vadd.f32 %v276, %v392
        %394 = vmatmul.bf16.gmra.mxu0 %v254
        %v395 = vpop.f32.mrf.mxu0
        %v396 = vadd.f32 %v276, %v395
        %v397 = vpop.f32.mrf.mxu0
        %v398 = vadd.f32 %v276, %v397
        %399 = vmatmul.bf16.gmra.mxu0 %v255
        %v400 = vpop.f32.mrf.mxu0
        %v401 = vadd.f32 %v276, %v400
        %v402 = vpop.f32.mrf.mxu0
        %v403 = vadd.f32 %v276, %v402
        %404 = vmatmul.bf16.gmra.mxu0 %v256
        %v405 = vpop.f32.mrf.mxu0
        %v406 = vadd.f32 %v276, %v405
        %v407 = vpop.f32.mrf.mxu0
        %v408 = vadd.f32 %v276, %v407
        %409 = vmatmul.bf16.gmra.mxu0 %v257
        %v410 = vpop.f32.mrf.mxu0
        %v411 = vadd.f32 %v276, %v410
        %v412 = vpop.f32.mrf.mxu0
        %v413 = vadd.f32 %v276, %v412
        %414 = vdwg.mxu0
        %v415 = vmax.f32 %v336, 0.0
        %v416 = vmax.f32 %v338, 0.0
        %v417 = vmax.f32 %v341, 0.0
        %v418 = vmax.f32 %v343, 0.0
        %v419 = vmax.f32 %v346, 0.0
        %v420 = vmax.f32 %v348, 0.0
        %v421 = vmax.f32 %v351, 0.0
        %v422 = vmax.f32 %v353, 0.0
        %v423 = vmax.f32 %v356, 0.0
        %v424 = vmax.f32 %v358, 0.0
        %v425 = vmax.f32 %v361, 0.0
        %v426 = vmax.f32 %v363, 0.0
        %v427 = vmax.f32 %v366, 0.0
        %v428 = vmax.f32 %v368, 0.0
        %v429 = vmax.f32 %v371, 0.0
        %v430 = vmax.f32 %v373, 0.0
        %v431 = vmax.f32 %v376, 0.0
        %v432 = vmax.f32 %v378, 0.0
        %v433 = vmax.f32 %v381, 0.0
        %v434 = vmax.f32 %v383, 0.0
        %v435 = vmax.f32 %v386, 0.0
        %v436 = vmax.f32 %v388, 0.0
        %v437 = vmax.f32 %v391, 0.0
        %v438 = vmax.f32 %v393, 0.0
        %v439 = vmax.f32 %v396, 0.0
        %v440 = vmax.f32 %v398, 0.0
        %v441 = vmax.f32 %v401, 0.0
        %v442 = vmax.f32 %v403, 0.0
        %v443 = vmax.f32 %v406, 0.0
        %v444 = vmax.f32 %v408, 0.0
        %v445 = vmax.f32 %v411, 0.0
        %v446 = vmax.f32 %v413, 0.0
        %v447 = vpack.c.bf16 %v415, %v415
        %v448 = vpack.c.bf16 %v416, %v416
        %v449 = vpack.c.bf16 %v417, %v417
        %v450 = vpack.c.bf16 %v418, %v418
        %v451 = vpack.c.bf16 %v419, %v419
        %v452 = vpack.c.bf16 %v420, %v420
        %v453 = vpack.c.bf16 %v421, %v421
        %v454 = vpack.c.bf16 %v422, %v422
        %v455 = vpack.c.bf16 %v423, %v423
        %v456 = vpack.c.bf16 %v424, %v424
        %v457 = vpack.c.bf16 %v425, %v425
        %v458 = vpack.c.bf16 %v426, %v426
        %v459 = vpack.c.bf16 %v427, %v427
        %v460 = vpack.c.bf16 %v428, %v428
        %v461 = vpack.c.bf16 %v429, %v429
        %v462 = vpack.c.bf16 %v430, %v430
        %v463 = vpack.c.bf16 %v431, %v431
        %v464 = vpack.c.bf16 %v432, %v432
        %v465 = vpack.c.bf16 %v433, %v433
        %v466 = vpack.c.bf16 %v434, %v434
        %v467 = vpack.c.bf16 %v435, %v435
        %v468 = vpack.c.bf16 %v436, %v436
        %v469 = vpack.c.bf16 %v437, %v437
        %v470 = vpack.c.bf16 %v438, %v438
        %v471 = vpack.c.bf16 %v439, %v439
        %v472 = vpack.c.bf16 %v440, %v440
        %v473 = vpack.c.bf16 %v441, %v441
        %v474 = vpack.c.bf16 %v442, %v442
        %v475 = vpack.c.bf16 %v443, %v443
        %v476 = vpack.c.bf16 %v444, %v444
        %v477 = vpack.c.bf16 %v445, %v445
        %v478 = vpack.c.bf16 %v446, %v446
        %479 = vst [vmem:[%s207] sm:$0xf] %v447
        %480 = vst [vmem:[%s207 + $0x4] sm:$0xf] %v448
        %481 = vst [vmem:[%s207 + $0x8] sm:$0xf] %v449
        %482 = vst [vmem:[%s207 + $0xc] sm:$0xf] %v450
        %483 = vst [vmem:[%s207 + $0x10] sm:$0xf] %v451
        %484 = vst [vmem:[%s207 + $0x14] sm:$0xf] %v452
        %485 = vst [vmem:[%s207 + $0x18] sm:$0xf] %v453
        %486 = vst [vmem:[%s207 + $0x1c] sm:$0xf] %v454
        %487 = vst [vmem:[%s207 + $0x20] sm:$0xf] %v455
        %488 = vst [vmem:[%s207 + $0x24] sm:$0xf] %v456
        %489 = vst [vmem:[%s207 + $0x28] sm:$0xf] %v457
        %490 = vst [vmem:[%s207 + $0x2c] sm:$0xf] %v458
        %491 = vst [vmem:[%s207 + $0x30] sm:$0xf] %v459
        %492 = vst [vmem:[%s207 + $0x34] sm:$0xf] %v460
        %493 = vst [vmem:[%s207 + $0x38] sm:$0xf] %v461
        %494 = vst [vmem:[%s207 + $0x3c] sm:$0xf] %v462
        %495 = vst [vmem:[%s207 + $0x40] sm:$0xf] %v463
        %496 = vst [vmem:[%s207 + $0x44] sm:$0xf] %v464
        %497 = vst [vmem:[%s207 + $0x48] sm:$0xf] %v465
        %498 = vst [vmem:[%s207 + $0x4c] sm:$0xf] %v466
        %499 = vst [vmem:[%s207 + $0x50] sm:$0xf] %v467
        %500 = vst [vmem:[%s207 + $0x54] sm:$0xf] %v468
        %501 = vst [vmem:[%s207 + $0x58] sm:$0xf] %v469
        %502 = vst [vmem:[%s207 + $0x5c] sm:$0xf] %v470
        %503 = vst [vmem:[%s207 + $0x60] sm:$0xf] %v471
        %504 = vst [vmem:[%s207 + $0x64] sm:$0xf] %v472
        %505 = vst [vmem:[%s207 + $0x68] sm:$0xf] %v473
        %506 = vst [vmem:[%s207 + $0x6c] sm:$0xf] %v474
        %507 = vst [vmem:[%s207 + $0x70] sm:$0xf] %v475
        %508 = vst [vmem:[%s207 + $0x74] sm:$0xf] %v476
        %509 = vst [vmem:[%s207 + $0x78] sm:$0xf] %v477
        %510 = vst [vmem:[%s207 + $0x7c] sm:$0xf] %v478
        %s511 = sand.u32 %s97, 1
        %s512 = scalar_lea.sflag [#allocation4], %s511
        %s513 = sand.u32 %s97, 1
        %s514 = smul.addr %s513, 128
        %s515 = scalar_lea.vmem [#allocation7], %s514
        // Predicated region
        $region41: #{tpu_custom_call.1} parent=31 // pred_check
          %p516 = pneg %p107
        $region42: #{tpu_custom_call.1} parent=31 // pred_check_branch
          %518 = sbr.rel (%p516) target = $region44
        $region43: #{tpu_custom_call.1} parent=31 // pred_region
          %s519 = smul.u32 32, %s21
          %521 = vsyncadd %s512, 0
          %s522 = smul.addr %s519, 4
          %s523 = scalar_lea.hbm %s3, %s522
          %s524 = sshll.u32 %s515, 4
          %s525 = int_to_ptr.vmem [resolvable:$true] %s524
          %s526 = sshll.u32 %s523, 4
          %s527 = int_to_ptr.hbm [resolvable:$true] %s526
          %532 = dma.vmem_to_hbm [thread:$0]  %s525, 2048, %s527, %s512, 64, 64, 4
        $region44: #{tpu_custom_call.1} parent=31 // pred_fallthru
          _
      $region32: #{tpu_custom_call.1} parent=5 // pred_fallthru
        _
      %p533 = scmp.le.s32.totalorder 2, %s16
      // Predicated region
      $region45: #{tpu_custom_call.1} parent=5 // pred_check
        %p534 = pneg %p533
      $region46: #{tpu_custom_call.1} parent=5 // pred_check_branch
        %536 = sbr.rel (%p534) target = $region48
      $region47: #{tpu_custom_call.1} parent=5 // pred_region
        %s537 = ssub.s32 %s16, 2
        // Predicated region
        $region49: #{tpu_custom_call.1} parent=47 // pred_check
          %p538 = pneg %p113
        $region50: #{tpu_custom_call.1} parent=47 // pred_check_branch
          %540 = sbr.rel (%p538) target = $region52
        $region51: #{tpu_custom_call.1} parent=47 // pred_region
          %s541 = sand.u32 %s98, 1
          %s542 = scalar_lea.sflag [#allocation4], %s541
          %s543 = sand.u32 %s98, 1
          %s544 = smul.addr %s543, 128
          %s545 = scalar_lea.vmem [#allocation7], %s544
          %547 = dma.done %s542, 2048
        $region52: #{tpu_custom_call.1} parent=47 // pred_fallthru
          _
      $region48: #{tpu_custom_call.1} parent=5 // pred_fallthru
        _
    $region6: #{tpu_custom_call.1} parent=1 // loop_footer
      %s20 = sadd.s32 1, %s16
    $region7: #{tpu_custom_call.1} parent=1 // loop_footer_branch
      %15 = sbr.rel target = $region3
    $region8: #{tpu_custom_call.1} parent=1 // loop_exit
      _
    %548 = vsyncpa [#allocation3], 1
    %s549 = scalar_lea.sflag [#allocation3], 1
    %550 = vsyncpa %s549, 1
    %551 = vsyncpa [#allocation6], 1
    %552 = vsyncpa [#allocation4], 1
    %s553 = scalar_lea.sflag [#allocation4], 1
    %554 = vsyncpa %s553, 1

</llo_original>
